<compile_context>
chip_gen: v7x
topology: tpu7x:2x2x1
jax: 0.10.0
libtpu: 0.0.40
codegen_flags: <defaults>
</compile_context>

<pallas_src>
import functools

import jax
import jax.numpy as jnp
from jax.experimental import pallas as pl
from jax.experimental.pallas import tpu as pltpu

_LABEL_PAD = 128  # lane width: makes acc / output / MXU N-dim lane-dense


def _round_up(x: int, m: int) -> int:
    return (x + m - 1) // m * m


def prepare_bow_params(weight, bias, *, tv: int = 2048, stream_dtype=jnp.bfloat16):
    """One-time (hoisted) parameter prep for the kernel.

    weight: (num_labels, vocab_size)  = nn.Linear.weight
    bias:   (num_labels,)             = nn.Linear.bias
    Returns:
      weight_t_p: (Vw, 128) stream_dtype — transposed, zero-padded labels,
                  vocab zero-padded so the vocab tile divides Vw.
      bias_p:     (1, 128) f32 — padded labels get -1e30 so they drop out of
                  the softmax without NaN risk.
    """
    num_labels, vocab = weight.shape
    assert num_labels <= _LABEL_PAD
    vx = _round_up(vocab, 128)
    tv_eff = min(max(128, _round_up(tv, 128)), vx)
    vw = _round_up(vx, tv_eff)

    w_p = jnp.zeros((vw, _LABEL_PAD), dtype=stream_dtype)
    w_p = w_p.at[:vocab, :num_labels].set(weight.T.astype(stream_dtype))
    b_p = jnp.full((1, _LABEL_PAD), -1e30, dtype=jnp.float32)
    b_p = b_p.at[0, :num_labels].set(bias.astype(jnp.float32))
    return w_p, b_p


def _bow_kernel(x_ref, w_ref, b_ref, o_ref, acc_ref, *,
                tv: int, v_limit: int, mask_tail: bool, w_resident: bool):
    # x_ref: (TB, TV) ; w_ref: (Vw, 128) resident or (TV, 128) tiled
    # b_ref: (1, 128) ; o_ref: (TB, 128) ; acc_ref: (TB, 128) f32 scratch
    k = pl.program_id(1)

    @pl.when(k == 0)
    def _init():
        # Start the accumulator at the (label-padded) bias.
        acc_ref[...] = jnp.broadcast_to(
            b_ref[...].astype(jnp.float32), acc_ref.shape)

    x_tile = x_ref[...]
    if mask_tail:
        # Only emitted when the vocab grid overshoots the x array: zero the
        # out-of-range columns so OOB-read garbage never reaches the MXU.
        col = jax.lax.broadcasted_iota(jnp.int32, x_tile.shape, 1) + k * tv
        x_tile = jnp.where(col < v_limit, x_tile, jnp.zeros_like(x_tile))

    if w_resident:
        start = pl.multiple_of(k * tv, 128)
        w_tile = w_ref[pl.ds(start, tv), :]
    else:
        w_tile = w_ref[...]

    # Partial linear: accumulate x_tile @ W_tile on the MXU in f32.
    acc_ref[...] += jnp.dot(x_tile, w_tile, preferred_element_type=jnp.float32)

    @pl.when(k == pl.num_programs(1) - 1)
    def _finalize():
        # Numerically stable log_softmax over the (padded) label lanes.
        z = acc_ref[...]
        m = jnp.max(z, axis=-1, keepdims=True)
        shifted = z - m
        lse = jnp.log(jnp.sum(jnp.exp(shifted), axis=-1, keepdims=True))
        o_ref[...] = (shifted - lse).astype(o_ref.dtype)


def bow_classifier(bow_vec, weight_t_p, bias_p, num_labels,
                   *, tb: int = 512, tv: int = 2048):
    """log_softmax(bow_vec @ W^T + b, axis=1) for a BoW classifier.

    bow_vec   : (B, V)    bf16 (preferred) or f32 count vectors
    weight_t_p: (Vw, 128) from prepare_bow_params
    bias_p    : (1, 128)  from prepare_bow_params
    """
    B, V = bow_vec.shape
    Vw, Lp = weight_t_p.shape
    assert Lp == _LABEL_PAD
    assert num_labels <= Lp

    # --- minimal (8,128) alignment; skipped entirely for aligned inputs -----
    b_al = _round_up(B, 8)
    v_arr = _round_up(V, 128)
    x = bow_vec
    if (b_al, v_arr) != (B, V):
        x = jnp.pad(x, ((0, b_al - B), (0, v_arr - V)))
    assert Vw >= v_arr, "weight_t_p vocab dim smaller than the input vocab"

    # --- tile selection ------------------------------------------------------
    tb_eff = min(max(8, _round_up(tb, 8)), b_al)
    n_b = pl.cdiv(b_al, tb_eff)
    if b_al > 8 and n_b < 2:
        # Make sure both v7x TensorCores get a batch tile (harmless elsewhere).
        tb_eff = _round_up(pl.cdiv(b_al, 2), 8)
        n_b = pl.cdiv(b_al, tb_eff)

    # Largest multiple of 128 that divides Vw and is <= requested tv, so the
    # resident-W slice pl.ds(k*tv_eff, tv_eff) never runs past Vw.
    tv_req = min(max(128, _round_up(tv, 128)), Vw)
    tv_eff = 128
    for cand in range(tv_req, 127, -128):
        if Vw % cand == 0:
            tv_eff = cand
            break
    n_k = Vw // tv_eff
    mask_tail = Vw > v_arr  # vocab grid overshoots the x array -> mask in-kernel

    # Keep W fully VMEM-resident (DMA'd once) unless it is unreasonably large.
    w_bytes_total = weight_t_p.size * weight_t_p.dtype.itemsize
    w_resident = w_bytes_total <= (24 << 20)

    kernel = functools.partial(
        _bow_kernel, tv=tv_eff, v_limit=v_arr,
        mask_tail=mask_tail, w_resident=w_resident)

    if w_resident:
        w_spec = pl.BlockSpec((Vw, Lp), lambda i, k: (0, 0))
    else:
        w_spec = pl.BlockSpec((tv_eff, Lp), lambda i, k: (k, 0))

    # Memory-bound cost hint for XLA (honest about W re-streams if tiled).
    cost = pl.CostEstimate(
        flops=2 * b_al * Vw * Lp,
        transcendentals=b_al * (Lp + 1),
        bytes_accessed=(x.size * x.dtype.itemsize
                        + w_bytes_total * (1 if w_resident else n_b)
                        + bias_p.size * bias_p.dtype.itemsize
                        + b_al * Lp * 4),
    )

    # VMEM: double-buffered x tiles + (resident or double-buffered) W
    # + accumulator + double-buffered output + headroom; clamp to 48 MiB so we
    # never request v7x's entire 64 MiB.
    vmem_need = (2 * tb_eff * tv_eff * x.dtype.itemsize
                 + (w_bytes_total if w_resident
                    else 2 * tv_eff * Lp * weight_t_p.dtype.itemsize)
                 + 3 * tb_eff * Lp * 4
                 + (2 << 20))
    vmem_limit = min(max(vmem_need, 32 << 20), 48 << 20)

    out = pl.pallas_call(
        kernel,
        out_shape=jax.ShapeDtypeStruct((b_al, Lp), jnp.float32),
        grid_spec=pltpu.PrefetchScalarGridSpec(
            num_scalar_prefetch=0,
            grid=(n_b, n_k),
            in_specs=[
                pl.BlockSpec((tb_eff, tv_eff), lambda i, k: (i, k)),  # x
                w_spec,                                               # W^T
                pl.BlockSpec((1, Lp), lambda i, k: (0, 0)),           # bias
            ],
            out_specs=pl.BlockSpec((tb_eff, Lp), lambda i, k: (i, 0)),
            scratch_shapes=[pltpu.VMEM((tb_eff, Lp), jnp.float32)],
        ),
        compiler_params=pltpu.CompilerParams(
            dimension_semantics=("parallel", "arbitrary"),
            vmem_limit_bytes=vmem_limit),
        cost_estimate=cost,
    )(x, weight_t_p, bias_p)

    return out[:B, :num_labels]


if __name__ == "__main__":
    # Small shapes consistent with the module: batch=2, vocab_size=32, labels=4
    B, VOCAB, LABELS = 2, 32, 4

    key = jax.random.PRNGKey(0)
    kx, kw, kb = jax.random.split(key, 3)

    # nn.Linear parameters: W (L, V), b (L,)
    weight = jax.random.normal(kw, (LABELS, VOCAB), dtype=jnp.float32) * 0.1
    bias = jax.random.normal(kb, (LABELS,), dtype=jnp.float32) * 0.1

    # Bag-of-words count vectors; producer-side bf16 cast (small ints are
    # exact in bf16) halves the HBM traffic of the dominant x stream.
    counts = jax.random.randint(kx, (B, VOCAB), 0, 5)
    bow_vec = counts.astype(jnp.bfloat16)

    # Hoisted ONCE at parameter setup: transpose + bf16 + label/vocab padding.
    weight_t_p, bias_p = prepare_bow_params(weight, bias)

    run = jax.jit(functools.partial(bow_classifier, num_labels=LABELS))
    out = jax.block_until_ready(run(bow_vec, weight_t_p, bias_p))

    # Reference in plain JAX, using the same bf16-rounded weights the kernel sees.
    w_used = weight.astype(jnp.bfloat16).astype(jnp.float32)
    ref = jax.nn.log_softmax(counts.astype(jnp.float32) @ w_used.T + bias, axis=1)

    assert out.shape == (B, LABELS)
    assert jnp.allclose(out, ref, atol=1e-4, rtol=1e-4), "mismatch vs reference"

    print("KERNEL_OK")
</pallas_src>

<mosaic_0001>
module attributes {stable_mosaic.version = 11 : i64} {
  func.func @_bow_kernel(%arg0: i32, %arg1: i32, %arg2: memref<8x128xbf16, #tpu.memory_space<vmem>>, %arg3: memref<128x128xbf16, #tpu.memory_space<vmem>>, %arg4: memref<1x128xf32, #tpu.memory_space<vmem>>, %arg5: memref<8x128xf32, #tpu.memory_space<vmem>>, %arg6: memref<8x128xf32, #tpu.memory_space<vmem>>) attributes {dimension_semantics = [#tpu.dimension_semantics<parallel>, #tpu.dimension_semantics<arbitrary>], iteration_bounds = array<i64: 1, 1>, scalar_prefetch = 0 : i64, scratch_operands = 1 : i64, tpu.core_type = #tpu.core_type<tc>, window_params = [{transform_indices = @transform_0, window_bounds = array<i64: 8, 128>}, {pipeline_mode = #tpu.pipeline_mode<synchronous>, transform_indices = @transform_1, window_bounds = array<i64: 128, 128>}, {pipeline_mode = #tpu.pipeline_mode<synchronous>, transform_indices = @transform_2, window_bounds = array<i64: 1, 128>}, {transform_indices = @transform_3, window_bounds = array<i64: 8, 128>}]} {
    %c0_i32 = arith.constant 0 : i32
    %0 = arith.cmpi eq, %arg1, %c0_i32 : i32
    %1 = arith.extui %0 : i1 to i32
    %c0_i32_0 = arith.constant 0 : i32
    %2 = arith.cmpi ne, %1, %c0_i32_0 : i32
    scf.if %2 {
      %c0_9 = arith.constant 0 : index
      %c0_10 = arith.constant 0 : index
      %15 = vector.load %arg4[%c0_9, %c0_10] : memref<1x128xf32, #tpu.memory_space<vmem>>, vector<1x128xf32>
      %16 = vector.shape_cast %15 : vector<1x128xf32> to vector<1x128xf32>
      %17 = vector.broadcast %16 : vector<1x128xf32> to vector<8x128xf32>
      %c0_11 = arith.constant 0 : index
      %c0_12 = arith.constant 0 : index
      %18 = vector.load %arg6[%c0_11, %c0_12] : memref<8x128xf32, #tpu.memory_space<vmem>>, vector<8x128xf32>
      tpu.vector_store %arg6[%c0_11, %c0_12], %17 {strides = array<i32>} : memref<8x128xf32, #tpu.memory_space<vmem>>, vector<8x128xf32>,
    } else {
    }
    %c0 = arith.constant 0 : index
    %c0_1 = arith.constant 0 : index
    %3 = vector.load %arg2[%c0, %c0_1] : memref<8x128xbf16, #tpu.memory_space<vmem>>, vector<8x128xbf16>
    %c128_i32 = arith.constant 128 : i32
    %4 = arith.muli %arg1, %c128_i32 : i32
    %5 = tpu.assume_multiple %4, 128 : i32
    %6 = arith.index_cast %5 : i32 to index
    %c0_2 = arith.constant 0 : index
    %7 = vector.load %arg3[%6, %c0_2] : memref<128x128xbf16, #tpu.memory_space<vmem>>, vector<128x128xbf16>
    %c0_3 = arith.constant 0 : index
    %c0_4 = arith.constant 0 : index
    %8 = vector.load %arg6[%c0_3, %c0_4] : memref<8x128xf32, #tpu.memory_space<vmem>>, vector<8x128xf32>
    %cst = arith.constant dense<0.000000e+00> : vector<8x128xf32>
    %9 = tpu.matmul %3, %7, %cst {dimension_numbers = #tpu.dot_dimension_numbers<[1], [0], [0], [1], [0, 0, 1, 1], [], []>} : vector<8x128xbf16>, vector<128x128xbf16>, vector<8x128xf32> -> vector<8x128xf32>
    %10 = arith.addf %8, %9 : vector<8x128xf32>
    %c0_5 = arith.constant 0 : index
    %c0_6 = arith.constant 0 : index
    %11 = vector.load %arg6[%c0_5, %c0_6] : memref<8x128xf32, #tpu.memory_space<vmem>>, vector<8x128xf32>
    tpu.vector_store %arg6[%c0_5, %c0_6], %10 {strides = array<i32>} : memref<8x128xf32, #tpu.memory_space<vmem>>, vector<8x128xf32>,
    %c0_i32_7 = arith.constant 0 : i32
    %12 = arith.cmpi eq, %arg1, %c0_i32_7 : i32
    %13 = arith.extui %12 : i1 to i32
    %c0_i32_8 = arith.constant 0 : i32
    %14 = arith.cmpi ne, %13, %c0_i32_8 : i32
    scf.if %14 {
      %c0_9 = arith.constant 0 : index
      %c0_10 = arith.constant 0 : index
      %15 = vector.load %arg6[%c0_9, %c0_10] : memref<8x128xf32, #tpu.memory_space<vmem>>, vector<8x128xf32>
      %cst_11 = arith.constant dense<0xFF800000> : vector<8xf32>
      %16 = vector.multi_reduction <maximumf>, %15, %cst_11 [1] : vector<8x128xf32> to vector<8xf32>
      %17 = vector.shape_cast %16 : vector<8xf32> to vector<8x1xf32>
      %18 = vector.broadcast %17 : vector<8x1xf32> to vector<8x128xf32>
      %19 = arith.subf %15, %18 : vector<8x128xf32>
      %20 = math.exp %19 : vector<8x128xf32>
      %cst_12 = arith.constant dense<0.000000e+00> : vector<8xf32>
      %21 = vector.multi_reduction <add>, %20, %cst_12 [1] : vector<8x128xf32> to vector<8xf32>
      %22 = vector.shape_cast %21 : vector<8xf32> to vector<8x1xf32>
      %23 = math.log %22 : vector<8x1xf32>
      %24 = vector.broadcast %23 : vector<8x1xf32> to vector<8x128xf32>
      %25 = arith.subf %19, %24 : vector<8x128xf32>
      %c0_13 = arith.constant 0 : index
      %c0_14 = arith.constant 0 : index
      %26 = vector.load %arg5[%c0_13, %c0_14] : memref<8x128xf32, #tpu.memory_space<vmem>>, vector<8x128xf32>
      tpu.vector_store %arg5[%c0_13, %c0_14], %25 {strides = array<i32>} : memref<8x128xf32, #tpu.memory_space<vmem>>, vector<8x128xf32>,
    } else {
    }
    return
  }
  func.func @transform_0(%arg0: i32, %arg1: i32) -> (i32, i32) {
    %c0_i32 = arith.constant 0 : i32
    return %arg0, %arg1 : i32, i32
  }
  func.func @transform_1(%arg0: i32, %arg1: i32) -> (i32, i32) {
    %c0_i32 = arith.constant 0 : i32
    %c0_i32_0 = arith.constant 0 : i32
    %c0_i32_1 = arith.constant 0 : i32
    return %c0_i32, %c0_i32_0 : i32, i32
  }
  func.func @transform_2(%arg0: i32, %arg1: i32) -> (i32, i32) {
    %c0_i32 = arith.constant 0 : i32
    %c0_i32_0 = arith.constant 0 : i32
    %c0_i32_1 = arith.constant 0 : i32
    return %c0_i32, %c0_i32_0 : i32, i32
  }
  func.func @transform_3(%arg0: i32, %arg1: i32) -> (i32, i32) {
    %c0_i32 = arith.constant 0 : i32
    %c0_i32_0 = arith.constant 0 : i32
    return %arg0, %c0_i32 : i32, i32
  }
}

</mosaic_0001>

<llo_original>
// kernel: bow_classifier.1
$region0: #{bow_classifier.1}
  #allocation0 [shape = 'u32[]', space=smem, size = 0x4, offset = 0x4, fixed_abs, tag = 'smem constant byte address 0x4 - core index']
  #allocation1 [shape = 'u32[144,128]{1,0:T(1,128)}', space=vmem, size = 0x12000, scoped, tag = 'internal scratch']
  #allocation2 [shape = 'f32[8,128]{1,0:T(8,128)}', space=vmem, size = 0x1000, scoped, tag = 'scratch operand']
  %s0 = inlined_call_operand.vmem [shape: bf16[8,128], index: 0, kind: input, shape index: {}]
  %s1 = inlined_call_operand.hbm [shape: bf16[128,128], index: 1, kind: input, shape index: {}]
  %s2 = inlined_call_operand.vmem [shape: f32[1,128], index: 2, kind: input, shape index: {}]
  %s3 = inlined_call_operand.vmem [shape: f32[8,128], index: 3, kind: output, shape index: {}]
  %s4 = sld [smem:[#allocation0]]
  $region34: #{bow_classifier.1} parent=0
    _
  %s6 = ssub.s32 1, %s4
  %s7 = scalar_select 0, %s6, %s4
  $region1: #{bow_classifier.1} parent=0
    #allocation3 [shape = 'u8[32768]{0}', space=vmem, size = 0x8000, scoped, tag = 'input window, operand 1, single buffered']
    #allocation4 [shape = 's32[1]{0}', space=sflag, size = 0x4, scoped, tag = 'scoped memory for bow_classifier.1']
    %8 = vsyncpa [#allocation4], 0
    // Predicated region
    $region2: #{bow_classifier.1} parent=1 // pred_check
      _
    $region3: #{bow_classifier.1} parent=1 // pred_check_branch
      %10 = sbr.rel (0) target = $region5
    $region4: #{bow_classifier.1} parent=1 // pred_region
      _
    $region5: #{bow_classifier.1} parent=1 // pred_fallthru
      _
    // Predicated region
    $region6: #{bow_classifier.1} parent=1 // pred_check
      _
    $region7: #{bow_classifier.1} parent=1 // pred_check_branch
      %12 = sbr.rel (0) target = $region9
    $region8: #{bow_classifier.1} parent=1 // pred_region
      %s14 = ssub.s32 1024, 1024
      %15 = vsyncadd [#allocation4], %s14
      %s16 = sshll.u32 [#allocation3], 4
      %s17 = int_to_ptr.vmem [resolvable:$true] %s16
      %22 = dma.hbm_to_vmem [thread:$0]  %s1, 1024, %s17, [#allocation4], 64, 64, 4
    $region9: #{bow_classifier.1} parent=1 // pred_fallthru
      _
    // Predicated region
    $region10: #{bow_classifier.1} parent=1 // pred_check
      _
    $region11: #{bow_classifier.1} parent=1 // pred_check_branch
      %24 = sbr.rel (0) target = $region13
    $region12: #{bow_classifier.1} parent=1 // pred_region
      _
    $region13: #{bow_classifier.1} parent=1 // pred_fallthru
      _
    // Predicated region
    $region14: #{bow_classifier.1} parent=1 // pred_check
      _
    $region15: #{bow_classifier.1} parent=1 // pred_check_branch
      %26 = sbr.rel (0) target = $region17
    $region16: #{bow_classifier.1} parent=1 // pred_region
      %27 = dma.done [#allocation4], 1024
    $region17: #{bow_classifier.1} parent=1 // pred_fallthru
      _
    %p29 = scmp.eq.s32.totalorder 0, 0
    // Predicated region
    $region18: #{bow_classifier.1} parent=1 // pred_check
      %p30 = pneg %p29
    $region19: #{bow_classifier.1} parent=1 // pred_check_branch
      %32 = sbr.rel (%p30) target = $region21
    $region20: #{bow_classifier.1} parent=1 // pred_region
      %v33 = vld [vmem:[%s2] sm:$0x1]
      %v35 = vlaneseq
      %v36 = vshrl.u32 %v35, 7
      %v37 = vsub.s32 0, %v36
      %v38 = vrot.slane %v33, %v37
      %40 = vst [vmem:[#allocation2] sm:$0xff] %v38
    $region21: #{bow_classifier.1} parent=1 // pred_fallthru
      _
    %v41 = vld [vmem:[%s0] sm:$0xf]
    %s42 = smul.u32 0, 128
    %s43 = sshra.s32 %s42, 3
    %s44 = sand.u32 %s42, 7
    %s45 = smul.addr %s43, 4
    %s46 = scalar_lea.vmem [#allocation3], %s45
    %v47 = vld [vmem:[%s46] sm:$0xf]
    %v48 = vld [vmem:[%s46 + $0x4] sm:$0xf]
    %v49 = vld [vmem:[%s46 + $0x8] sm:$0xf]
    %v50 = vld [vmem:[%s46 + $0xc] sm:$0xf]
    %v51 = vld [vmem:[%s46 + $0x10] sm:$0xf]
    %v52 = vld [vmem:[%s46 + $0x14] sm:$0xf]
    %v53 = vld [vmem:[%s46 + $0x18] sm:$0xf]
    %v54 = vld [vmem:[%s46 + $0x1c] sm:$0xf]
    %v55 = vld [vmem:[%s46 + $0x20] sm:$0xf]
    %v56 = vld [vmem:[%s46 + $0x24] sm:$0xf]
    %v57 = vld [vmem:[%s46 + $0x28] sm:$0xf]
    %v58 = vld [vmem:[%s46 + $0x2c] sm:$0xf]
    %v59 = vld [vmem:[%s46 + $0x30] sm:$0xf]
    %v60 = vld [vmem:[%s46 + $0x34] sm:$0xf]
    %v61 = vld [vmem:[%s46 + $0x38] sm:$0xf]
    %v62 = vld [vmem:[%s46 + $0x3c] sm:$0xf]
    %v63 = vld [vmem:[#allocation2] sm:$0xff]
    %v80 = vunpack.c.l.b16 %v47
    %v81 = vunpack.c.l.b16 %v48
    %v82 = vunpack.c.l.b16 %v49
    %v83 = vunpack.c.l.b16 %v50
    %v84 = vunpack.c.l.b16 %v51
    %v85 = vunpack.c.l.b16 %v52
    %v86 = vunpack.c.l.b16 %v53
    %v87 = vunpack.c.l.b16 %v54
    %v88 = vunpack.c.l.b16 %v55
    %v89 = vunpack.c.l.b16 %v56
    %v90 = vunpack.c.l.b16 %v57
    %v91 = vunpack.c.l.b16 %v58
    %v92 = vunpack.c.l.b16 %v59
    %v93 = vunpack.c.l.b16 %v60
    %v94 = vunpack.c.l.b16 %v61
    %v95 = vunpack.c.l.b16 %v62
    %v96 = vpack.c.b16 %v81, %v80
    %v97 = vpack.c.b16 %v83, %v82
    %v98 = vpack.c.b16 %v85, %v84
    %v99 = vpack.c.b16 %v87, %v86
    %v100 = vpack.c.b16 %v89, %v88
    %v101 = vpack.c.b16 %v91, %v90
    %v102 = vpack.c.b16 %v93, %v92
    %v103 = vpack.c.b16 %v95, %v94
    %112 = vmatprep.subr.bf16.mxu0 0
    %113 = vmatpush1.bf16.msra.mxu0 %v96
    %114 = vmatprep.subr.bf16.mxu0 0
    %115 = vmatpush1.bf16.msra.mxu0 %v97
    %116 = vmatprep.subr.bf16.mxu0 0
    %117 = vmatpush1.bf16.msra.mxu0 %v98
    %118 = vmatprep.subr.bf16.mxu0 0
    %119 = vmatpush1.bf16.msra.mxu0 %v99
    %120 = vmatprep.subr.bf16.mxu0 0
    %121 = vmatpush1.bf16.msra.mxu0 %v100
    %122 = vmatprep.subr.bf16.mxu0 0
    %123 = vmatpush1.bf16.msra.mxu0 %v101
    %124 = vmatprep.subr.bf16.mxu0 0
    %125 = vmatpush1.bf16.msra.mxu0 %v102
    %126 = vmatprep.subr.bf16.mxu0 0
    %127 = vmatpush1.bf16.msra.mxu0 %v103
    %128 = vmatprep.subr.bf16.mxu0 0
    %129 = vmatpush1.bf16.msra.mxu0 0
    %130 = vmatprep.subr.bf16.mxu0 0
    %131 = vmatpush1.bf16.msra.mxu0 0
    %132 = vmatprep.subr.bf16.mxu0 0
    %133 = vmatpush1.bf16.msra.mxu0 0
    %134 = vmatprep.subr.bf16.mxu0 0
    %135 = vmatpush1.bf16.msra.mxu0 0
    %136 = vmatprep.subr.bf16.mxu0 0
    %137 = vmatpush1.bf16.msra.mxu0 0
    %138 = vmatprep.subr.bf16.mxu0 0
    %139 = vmatpush1.bf16.msra.mxu0 0
    %140 = vmatprep.subr.bf16.mxu0 0
    %141 = vmatpush1.bf16.msra.mxu0 0
    %142 = vmatprep.subr.bf16.mxu0 0
    %143 = vmatpush1.bf16.msra.mxu0 0
    %144 = vmatprep.mubr.bf16.mxu0 0
    %145 = vmatmul.mubr.bf16.gmra.mrb[0].mxu0 %v41
    %v146 = vpop.f32.mrb[0].mxu0
    %v147 = vadd.f32 0.0, %v146
    %v148 = vpop.f32.mrb[0].mxu0
    %v149 = vpop.f32.mrb[0].mxu0
    %v150 = vpop.f32.mrb[0].mxu0
    %151 = vdwg.mxu0
    %v152 = vadd.f32 %v63, %v147
    %153 = vst [vmem:[#allocation2] sm:$0xff] %v152
    // Predicated region
    $region22: #{bow_classifier.1} parent=1 // pred_check
      %p154 = pneg %p29
    $region23: #{bow_classifier.1} parent=1 // pred_check_branch
      %156 = sbr.rel (%p154) target = $region25
    $region24: #{bow_classifier.1} parent=1 // pred_region
      %v157 = vld [vmem:[#allocation2] sm:$0xff]
      %158 = vmax.xlane.f32.xlu0 %v157
      %v159 = vpop.xlane.xlu0 %158
      %v160 = vsub.f32 %v157, %v159
      %v161 = vmul.f32 %v160, 1.442695
      %v162 = vpow.pop %v161
      %163 = vadd.xlane.f32.xlu0 %v162
      %v164 = vpop.xlane.xlu0 %163
      %v165 = vlog2.pop %v164
      %v166 = vmul.f32 %v165, 0.6931472
      %v167 = vsub.f32 %v160, %v166
      %168 = vst [vmem:[%s3] sm:$0xff] %v167
    $region25: #{bow_classifier.1} parent=1 // pred_fallthru
      _
    // Predicated region
    $region26: #{bow_classifier.1} parent=1 // pred_check
      _
    $region27: #{bow_classifier.1} parent=1 // pred_check_branch
      %170 = sbr.rel (0) target = $region29
    $region28: #{bow_classifier.1} parent=1 // pred_region
      _
    $region29: #{bow_classifier.1} parent=1 // pred_fallthru
      _
    // Predicated region
    $region30: #{bow_classifier.1} parent=1 // pred_check
      _
    $region31: #{bow_classifier.1} parent=1 // pred_check_branch
      %172 = sbr.rel (0) target = $region33
    $region32: #{bow_classifier.1} parent=1 // pred_region
      _
    $region33: #{bow_classifier.1} parent=1 // pred_fallthru
      _
    %173 = vsyncpa [#allocation4], 1

</llo_original>
